<compile_context>
chip_gen: v5e
topology: v5e:2x2
jax: 0.10.0
libtpu: 0.0.40
codegen_flags: <defaults>
</compile_context>

<pallas_src>
import functools
import numpy as np

import jax
import jax.numpy as jnp
from jax.experimental import pallas as pl
from jax.experimental.pallas import tpu as pltpu


# -----------------------------------------------------------------------------
# Glue helpers (pure reshape/transpose/gather -> plain JAX / numpy)
# -----------------------------------------------------------------------------
def window_partition(x, ws):
    """(B, H, W, C) -> (B*nW, ws, ws, C)  (works for np and jnp)."""
    B, H, W, C = x.shape
    x = x.reshape(B, H // ws, ws, W // ws, ws, C)
    x = x.transpose(0, 1, 3, 2, 4, 5)
    return x.reshape(-1, ws, ws, C)


def window_reverse(windows, ws, H, W):
    """(B*nW, N(or ws,ws), C) -> (B, H, W, C)."""
    B = windows.shape[0] // ((H // ws) * (W // ws))
    x = windows.reshape(B, H // ws, W // ws, ws, ws, -1)
    x = x.transpose(0, 1, 3, 2, 4, 5)
    return x.reshape(B, H, W, -1)


def relative_position_index(ws):
    coords = np.stack(np.meshgrid(np.arange(ws), np.arange(ws), indexing="ij"))
    cf = coords.reshape(2, -1)
    rel = cf[:, :, None] - cf[:, None, :]
    rel = rel.transpose(1, 2, 0).copy()
    rel[:, :, 0] += ws - 1
    rel[:, :, 1] += ws - 1
    rel[:, :, 0] *= 2 * ws - 1
    return rel.sum(-1)  # (N, N)


def relative_bias(table, ws):
    """table: ((2ws-1)^2, heads) -> (heads, N, N), f32."""
    idx = relative_position_index(ws)
    N = ws * ws
    bias = table[idx.reshape(-1)].reshape(N, N, -1)
    return jnp.transpose(bias, (2, 0, 1)).astype(jnp.float32)


def build_attn_mask(H, W, ws, shift):
    """Shifted-window attention mask, (nW, N, N) with 0 / -100 entries."""
    img_mask = np.zeros((1, H, W, 1), dtype=np.float32)
    slices = (slice(0, -ws), slice(-ws, -shift), slice(-shift, None))
    cnt = 0
    for hs in slices:
        for wsl in slices:
            img_mask[:, hs, wsl, :] = cnt
            cnt += 1
    mw = window_partition(img_mask, ws).reshape(-1, ws * ws)
    am = mw[:, None, :] - mw[:, :, None]
    am = np.where(am != 0, -100.0, 0.0).astype(np.float32)
    return jnp.asarray(am)


def _gelu(x):
    return jax.nn.gelu(x, approximate=True)


# -----------------------------------------------------------------------------
# Block sizing / compiler params helpers
# -----------------------------------------------------------------------------
def _block_bytes(*blocks):
    """Rough double-buffered VMEM footprint of a pallas_call's blocks."""
    tot = 0
    for shape, dtype in blocks:
        tot += 2 * int(np.prod(shape)) * jnp.dtype(dtype).itemsize
    return tot


def _vmem_cap():
    """3/4 of physical VMEM (v7x: 64 MiB -> 48 MiB); safe fallback 48 MiB."""
    try:
        return int(pltpu.get_tpu_info().vmem_capacity_bytes) * 3 // 4
    except Exception:
        return 48 * 2 ** 20


def _mosaic_params(semantics, needed_bytes):
    vmem = None
    if needed_bytes > 12 * 2 ** 20:
        vmem = int(min(max(needed_bytes * 5 // 4, 16 * 2 ** 20), _vmem_cap()))
    return pltpu.CompilerParams(dimension_semantics=semantics,
                                vmem_limit_bytes=vmem)


def _choose_l_tile(L, C):
    cap = 1024 if C <= 256 else 512
    if L <= cap:
        return L
    for t in (1024, 512, 256, 128, 64, 32, 16, 8):
        if t <= cap and L % t == 0:
            return t
    return L


def _choose_wpb(B, nW, N, target_rows=512, min_steps=2):
    """Windows per attention grid step: a divisor of B*nW that is either a
    multiple of nW (whole images) or a divisor of nW (sub-image split), with
    ~target_rows token rows per step and >=min_steps grid steps (2 TCs)."""
    total = B * nW
    min_steps = min(min_steps, total)
    best = 1
    for c in range(1, total + 1):
        if total % c:
            continue
        if c % nW != 0 and nW % c != 0:
            continue
        if c * N <= target_rows and total // c >= min_steps:
            best = c
    return best


# -----------------------------------------------------------------------------
# Pallas kernels (hot paths)
# -----------------------------------------------------------------------------
def adain_qkv_kernel(x_ref, sc_ref, sh_ref, w_ref, b_ref, o_ref, *, cd):
    """L-tile: fused AdaIN (precomputed per-(batch,channel) scale/shift that
    folds the hoisted instance-norm stats) + QKV projection (scale folded)."""
    x = x_ref[0]                                     # (TL, C) f32
    ada = x * sc_ref[0] + sh_ref[0]                  # f32
    o_ref[0] = (jnp.dot(ada.astype(cd), w_ref[...],
                        preferred_element_type=jnp.float32)
                + b_ref[...]).astype(o_ref.dtype)


def window_attn_kernel(qkv_ref, bm1_ref, bm2_ref, o_ref, *, heads, head_dim):
    """Batched-window double attention (W-MSA branch + SW-MSA branch) with
    relative-position bias (+ shifted-window mask folded into bm2).

    qkv layout along channels: [q1 k1 v1 | q2 k2 v2], each Ch = heads*head_dim.
    Per head: statically sliced (N x hd) matmuls; per-head outputs are
    concatenated once and written with a single lane-dense store of C=2*Ch."""
    qkv = qkv_ref[...]                               # (Wb, N, 6*Ch)
    Wb, N = qkv.shape[0], qkv.shape[1]
    Ch = heads * head_dim
    outs = []
    for br, bm_ref in ((0, bm1_ref), (1, bm2_ref)):
        base = br * 3 * Ch
        for h in range(heads):                       # small static loop
            lo = h * head_dim
            q = qkv[:, :, base + lo:base + lo + head_dim]
            k = qkv[:, :, base + Ch + lo:base + Ch + lo + head_dim]
            v = qkv[:, :, base + 2 * Ch + lo:base + 2 * Ch + lo + head_dim]
            s = jnp.einsum('wnd,wmd->wnm', q, k,
                           preferred_element_type=jnp.float32)    # (Wb, N, N)
            bm = bm_ref[h]                            # (nWb, N, N) f32
            nWb = bm.shape[0]
            s = (s.reshape(Wb // nWb, nWb, N, N) + bm[None]).reshape(Wb, N, N)
            # exact softmax (exp on EUP, exact reciprocal of the (Wb,N,1) sums)
            s_max = jnp.max(s, axis=-1, keepdims=True)
            e = jnp.exp(s - s_max)
            p = e * (1.0 / jnp.sum(e, axis=-1, keepdims=True))
            outs.append(jnp.einsum('wnm,wmd->wnd', p.astype(qkv.dtype), v,
                                   preferred_element_type=jnp.float32))
    o_ref[...] = jnp.concatenate(outs, axis=-1).astype(o_ref.dtype)


def proj_skip_kernel(a1_ref, a2_ref, x_ref, w1_ref, w2_ref, b_ref,
                     y_ref, sum_ref, sq_ref):
    """L-tile: attn_proj (split over the two channel halves) + first residual,
    plus per-tile sum / sum-of-squares of y for the hoisted InstanceNorm-2."""
    proj = (jnp.dot(a1_ref[0], w1_ref[...], preferred_element_type=jnp.float32)
            + jnp.dot(a2_ref[0], w2_ref[...], preferred_element_type=jnp.float32)
            + b_ref[...])
    y = proj + x_ref[0]
    y_ref[0] = y.astype(y_ref.dtype)
    sum_ref[0, 0] = jnp.sum(y, axis=0, keepdims=True)
    sq_ref[0, 0] = jnp.sum(y * y, axis=0, keepdims=True)


def adain_mlp_kernel(y_ref, x_ref, sc_ref, sh_ref,
                     w1_ref, b1_ref, w2_ref, b2_ref, o_ref, *, cd):
    """L-tile: AdaIN-2 (hoisted stats folded into scale/shift) + MLP + skip2.
    skip2 == proj == y - skip1, recovered without re-reading proj."""
    y = y_ref[0]                                     # (TL, C) f32
    ada = y * sc_ref[0] + sh_ref[0]                  # f32
    h = jnp.dot(ada.astype(cd), w1_ref[...],
                preferred_element_type=jnp.float32) + b1_ref[...]
    h = _gelu(h)                                     # f32
    out = jnp.dot(h.astype(cd), w2_ref[...],
                  preferred_element_type=jnp.float32) + b2_ref[...]
    o_ref[0] = (out + (y - x_ref[0])).astype(o_ref.dtype)


# -----------------------------------------------------------------------------
# pallas_call wrappers
# -----------------------------------------------------------------------------
def adain_qkv_pallas(x, scale_s, shift_s, Wc, bc, *, out_dtype, tl):
    B, L, C = x.shape
    C3 = Wc.shape[1]
    vmem = _block_bytes(((1, tl, C), x.dtype), ((C, C3), Wc.dtype),
                        ((1, C3), jnp.float32), ((1, tl, C3), out_dtype))
    return pl.pallas_call(
        functools.partial(adain_qkv_kernel, cd=Wc.dtype),
        out_shape=jax.ShapeDtypeStruct((B, L, C3), out_dtype),
        grid=(B, L // tl),
        in_specs=[
            pl.BlockSpec((1, tl, C), lambda b, l: (b, l, 0)),
            pl.BlockSpec((1, 1, C), lambda b, l: (b, 0, 0)),
            pl.BlockSpec((1, 1, C), lambda b, l: (b, 0, 0)),
            pl.BlockSpec((C, C3), lambda b, l: (0, 0)),
            pl.BlockSpec((1, C3), lambda b, l: (0, 0)),
        ],
        out_specs=pl.BlockSpec((1, tl, C3), lambda b, l: (b, l, 0)),
        compiler_params=_mosaic_params(("parallel", "parallel"), vmem),
    )(x, scale_s, shift_s, Wc, bc)


def window_attention_pallas(qkv_win, bm1, bm2, *, heads, head_dim, wpb,
                            out_dtype):
    BW, N, C6 = qkv_win.shape
    C = 2 * heads * head_dim
    nWb2 = min(wpb, bm2.shape[1])
    n_blocks2 = bm2.shape[1] // nWb2
    if n_blocks2 == 1:
        bm2_map = lambda g: (0, 0, 0, 0)
    else:
        bm2_map = lambda g, nb=n_blocks2: (0, g % nb, 0, 0)
    vmem = _block_bytes(((wpb, N, C6), qkv_win.dtype),
                        ((heads, 1, N, N), jnp.float32),
                        ((heads, nWb2, N, N), jnp.float32),
                        ((wpb, N, C), out_dtype))
    # rough estimate of in-kernel temporaries (scores + per-head outputs)
    vmem += (2 * wpb * N * N + 2 * wpb * N * C) * 4
    return pl.pallas_call(
        functools.partial(window_attn_kernel, heads=heads, head_dim=head_dim),
        out_shape=jax.ShapeDtypeStruct((BW, N, C), out_dtype),
        grid=(BW // wpb,),
        in_specs=[
            pl.BlockSpec((wpb, N, C6), lambda g: (g, 0, 0)),
            pl.BlockSpec((heads, 1, N, N), lambda g: (0, 0, 0, 0)),
            pl.BlockSpec((heads, nWb2, N, N), bm2_map),
        ],
        out_specs=pl.BlockSpec((wpb, N, C), lambda g: (g, 0, 0)),
        compiler_params=_mosaic_params(("parallel",), vmem),
    )(qkv_win, bm1, bm2)


def proj_skip_pallas(attn1, attn2, x, Wp1, Wp2, bp, *, tl):
    B, L, C = x.shape
    Ch = attn1.shape[-1]
    nt = L // tl
    vmem = _block_bytes(((1, tl, Ch), attn1.dtype), ((1, tl, Ch), attn2.dtype),
                        ((1, tl, C), x.dtype), ((Ch, C), Wp1.dtype),
                        ((Ch, C), Wp2.dtype), ((1, tl, C), jnp.float32))
    return pl.pallas_call(
        proj_skip_kernel,
        out_shape=(jax.ShapeDtypeStruct((B, L, C), jnp.float32),
                   jax.ShapeDtypeStruct((B, nt, 1, C), jnp.float32),
                   jax.ShapeDtypeStruct((B, nt, 1, C), jnp.float32)),
        grid=(B, nt),
        in_specs=[
            pl.BlockSpec((1, tl, Ch), lambda b, l: (b, l, 0)),
            pl.BlockSpec((1, tl, Ch), lambda b, l: (b, l, 0)),
            pl.BlockSpec((1, tl, C), lambda b, l: (b, l, 0)),
            pl.BlockSpec((Ch, C), lambda b, l: (0, 0)),
            pl.BlockSpec((Ch, C), lambda b, l: (0, 0)),
            pl.BlockSpec((1, C), lambda b, l: (0, 0)),
        ],
        out_specs=(pl.BlockSpec((1, tl, C), lambda b, l: (b, l, 0)),
                   pl.BlockSpec((1, 1, 1, C), lambda b, l: (b, l, 0, 0)),
                   pl.BlockSpec((1, 1, 1, C), lambda b, l: (b, l, 0, 0))),
        compiler_params=_mosaic_params(("parallel", "parallel"), vmem),
    )(attn1, attn2, x, Wp1, Wp2, bp)


def adain_mlp_pallas(y, x, sc, sh, W1, b1, W2, b2, *, tl):
    B, L, C = x.shape
    hid = W1.shape[1]
    cd = W1.dtype
    vmem = _block_bytes(((1, tl, C), y.dtype), ((1, tl, C), x.dtype),
                        ((C, hid), cd), ((hid, C), cd),
                        ((1, tl, C), jnp.float32))
    return pl.pallas_call(
        functools.partial(adain_mlp_kernel, cd=cd),
        out_shape=jax.ShapeDtypeStruct((B, L, C), jnp.float32),
        grid=(B, L // tl),
        in_specs=[
            pl.BlockSpec((1, tl, C), lambda b, l: (b, l, 0)),
            pl.BlockSpec((1, tl, C), lambda b, l: (b, l, 0)),
            pl.BlockSpec((1, 1, C), lambda b, l: (b, 0, 0)),
            pl.BlockSpec((1, 1, C), lambda b, l: (b, 0, 0)),
            pl.BlockSpec((C, hid), lambda b, l: (0, 0)),
            pl.BlockSpec((1, hid), lambda b, l: (0, 0)),
            pl.BlockSpec((hid, C), lambda b, l: (0, 0)),
            pl.BlockSpec((1, C), lambda b, l: (0, 0)),
        ],
        out_specs=pl.BlockSpec((1, tl, C), lambda b, l: (b, l, 0)),
        compiler_params=_mosaic_params(("parallel", "parallel"), vmem),
    )(y, x, sc, sh, W1, b1, W2, b2)


# -----------------------------------------------------------------------------
# StyleSwinBlock forward (Pallas) and a pure-JAX f32 reference
# -----------------------------------------------------------------------------
def style_swin_block_pallas(x, style, p, cfg, compute_dtype=jnp.bfloat16):
    B, L, C = x.shape
    H, W, ws, heads, shift = (cfg["H"], cfg["W"], cfg["window_dim"],
                              cfg["heads"], cfg["shift"])
    Ch = C // 2
    h2 = heads // 2
    hd = Ch // h2
    N = ws * ws
    nW = (H // ws) * (W // ws)
    hid = p["Wmlp1"].shape[1]
    cd = compute_dtype
    eps = 1e-5
    tl = _choose_l_tile(L, C)

    # ---- style affine + hoisted InstanceNorm-1 stats (tiny XLA glue) -------
    with jax.default_matmul_precision("highest"):
        ms1 = style @ p["Ws1"] + p["bs1"]
    mean1, std1 = ms1[:, None, :C], ms1[:, None, C:]
    mu1 = jnp.mean(x, axis=1, keepdims=True)
    var1 = jnp.mean(jnp.square(x - mu1), axis=1, keepdims=True)
    scale1 = std1 * jax.lax.rsqrt(var1 + eps)
    shift1 = mean1 - scale1 * mu1

    # Permute QKV weight columns once -> branch-contiguous [q1 k1 v1|q2 k2 v2],
    # and fold the softmax scale into the q columns (in f32, before bf16 cast).
    perm = np.concatenate([
        np.arange(0, Ch), np.arange(C, C + Ch), np.arange(2 * C, 2 * C + Ch),
        np.arange(Ch, C), np.arange(C + Ch, 2 * C), np.arange(2 * C + Ch, 3 * C)])
    attn_scale = hd ** -0.5
    col_scale = np.ones((3 * C,), np.float32)
    col_scale[0:Ch] = attn_scale                    # q1 columns
    col_scale[3 * Ch:4 * Ch] = attn_scale           # q2 columns
    Wqkv = (p["Wqkv"][:, perm] * col_scale[None, :]).astype(cd)
    bqkv = (p["bqkv"][perm] * col_scale).reshape(1, 3 * C).astype(jnp.float32)

    qkv = adain_qkv_pallas(x, scale1, shift1, Wqkv, bqkv,
                           out_dtype=cd, tl=tl)                 # (B, L, 3C)

    # ---- window partition glue (XLA gathers) --------------------------------
    qkv_sp = qkv.reshape(B, H, W, 3 * C)
    if shift > 0:
        half2 = jnp.roll(qkv_sp[..., 3 * Ch:], shift=(-shift, -shift),
                         axis=(1, 2))
        qkv_sp = jnp.concatenate([qkv_sp[..., :3 * Ch], half2], axis=-1)
    qkv_win = window_partition(qkv_sp, ws).reshape(-1, N, 3 * C)  # (B*nW,N,3C)

    # ---- relative-position bias (+ mask) precomputed once, kept resident ----
    bias1 = relative_bias(p["bias_table1"], ws)                 # (h2, N, N)
    bias2 = relative_bias(p["bias_table2"], ws)
    bm1 = bias1[:, None]                                        # (h2, 1, N, N)
    if shift > 0:
        bm2 = bias2[:, None] + cfg["attn_mask"][None]           # (h2, nW, N, N)
    else:
        bm2 = bias2[:, None]

    wpb = _choose_wpb(B, nW, N)
    out_win = window_attention_pallas(qkv_win, bm1, bm2, heads=h2, head_dim=hd,
                                      wpb=wpb, out_dtype=cd)    # (B*nW, N, C)

    out_img = window_reverse(out_win, ws, H, W)                 # (B, H, W, C)
    attn1 = out_img[..., :Ch]
    attn2 = out_img[..., Ch:]
    if shift > 0:
        attn2 = jnp.roll(attn2, shift=(shift, shift), axis=(1, 2))
    attn1 = attn1.reshape(B, L, Ch)
    attn2 = attn2.reshape(B, L, Ch)

    # ---- tail stage A: attn_proj + residual (+ per-tile y statistics) -------
    Wp = p["Wproj"].astype(cd)
    y, ysum, ysq = proj_skip_pallas(
        attn1, attn2, x, Wp[:Ch], Wp[Ch:],
        p["bproj"].reshape(1, C).astype(jnp.float32), tl=tl)

    # ---- hoisted InstanceNorm-2 stats from the per-tile sums ----------------
    with jax.default_matmul_precision("highest"):
        ms2 = style @ p["Ws2"] + p["bs2"]
    mean2, std2 = ms2[:, None, :C], ms2[:, None, C:]
    mu2 = (jnp.sum(ysum, axis=(1, 2)) / L)[:, None, :]          # (B, 1, C)
    ex2 = (jnp.sum(ysq, axis=(1, 2)) / L)[:, None, :]
    var2 = jnp.maximum(ex2 - mu2 * mu2, 0.0)
    scale2 = std2 * jax.lax.rsqrt(var2 + eps)
    shift2 = mean2 - scale2 * mu2

    # ---- tail stage B: AdaIN-2 + MLP + skip2 (L-tiled) ----------------------
    return adain_mlp_pallas(y, x, scale2, shift2,
                            p["Wmlp1"].astype(cd),
                            p["bmlp1"].reshape(1, hid).astype(jnp.float32),
                            p["Wmlp2"].astype(cd),
                            p["bmlp2"].reshape(1, C).astype(jnp.float32),
                            tl=tl)


def style_swin_block_ref(x, style, p, cfg):
    B, L, C = x.shape
    H, W, ws, heads, shift = (cfg["H"], cfg["W"], cfg["window_dim"],
                              cfg["heads"], cfg["shift"])
    Ch = C // 2
    h2 = heads // 2
    hd = Ch // h2
    scale = hd ** -0.5
    N = ws * ws

    def adain(z, Ws, bs):
        ms = style @ Ws + bs
        mean_s, std_s = ms[:, None, :C], ms[:, None, C:]
        mu = z.mean(axis=1, keepdims=True)
        var = ((z - mu) ** 2).mean(axis=1, keepdims=True)
        return mean_s + std_s * (z - mu) / jnp.sqrt(var + 1e-5)

    skip1 = x
    a1 = adain(x, p["Ws1"], p["bs1"])
    qkv = a1 @ p["Wqkv"] + p["bqkv"]
    qkv = qkv.reshape(B, L, 3, C).transpose(2, 0, 1, 3).reshape(3, B, H, W, C)
    qkv1, qkv2 = qkv[..., :Ch], qkv[..., Ch:]
    if shift > 0:
        qkv2 = jnp.roll(qkv2, shift=(-shift, -shift), axis=(2, 3))

    def to_win(z):
        return window_partition(z, ws).reshape(-1, N, Ch)

    def attn(q, k, v, bias, mask):
        BW = q.shape[0]
        qh = q.reshape(BW, N, h2, hd).transpose(0, 2, 1, 3)
        kh = k.reshape(BW, N, h2, hd).transpose(0, 2, 1, 3)
        vh = v.reshape(BW, N, h2, hd).transpose(0, 2, 1, 3)
        s = (qh * scale) @ jnp.swapaxes(kh, -1, -2) + bias[None]
        if mask is not None:
            s = s + mask[:, None]
        pm = jax.nn.softmax(s, axis=-1)
        o = pm @ vh
        return o.transpose(0, 2, 1, 3).reshape(BW, N, Ch)

    bias1 = relative_bias(p["bias_table1"], ws)
    bias2 = relative_bias(p["bias_table2"], ws)
    mask2 = jnp.tile(cfg["attn_mask"], (B, 1, 1)) if shift > 0 else None

    x_w = attn(to_win(qkv1[0]), to_win(qkv1[1]), to_win(qkv1[2]), bias1, None)
    x_sw = attn(to_win(qkv2[0]), to_win(qkv2[1]), to_win(qkv2[2]), bias2, mask2)

    x_w = window_reverse(x_w, ws, H, W)
    x_sw = window_reverse(x_sw, ws, H, W)
    if shift > 0:
        x_sw = jnp.roll(x_sw, shift=(shift, shift), axis=(1, 2))
    out = jnp.concatenate([x_w, x_sw], axis=-1).reshape(B, L, C)
    out = out @ p["Wproj"] + p["bproj"]
    skip2 = out
    a2 = adain(out + skip1, p["Ws2"], p["bs2"])
    h = _gelu(a2 @ p["Wmlp1"] + p["bmlp1"])
    return h @ p["Wmlp2"] + p["bmlp2"] + skip2


# -----------------------------------------------------------------------------
# Deterministic parameter init
# -----------------------------------------------------------------------------
def init_params(key, C, n_style, hid, ws, heads):
    h2 = heads // 2
    ks = jax.random.split(key, 10)

    def lin(k, fan_in, fan_out):
        kw, kb = jax.random.split(k)
        w = jax.random.normal(kw, (fan_in, fan_out), jnp.float32) / np.sqrt(fan_in)
        b = jax.random.normal(kb, (fan_out,), jnp.float32) * 0.02
        return w, b

    p = {}
    p["Ws1"], bs1 = lin(ks[0], n_style, 2 * C)
    p["bs1"] = bs1.at[C:].add(1.0)          # std branch biased toward 1
    p["Wqkv"], p["bqkv"] = lin(ks[1], C, 3 * C)
    p["bias_table1"] = jax.random.normal(ks[2], ((2 * ws - 1) ** 2, h2),
                                         jnp.float32) * 0.02
    p["bias_table2"] = jax.random.normal(ks[3], ((2 * ws - 1) ** 2, h2),
                                         jnp.float32) * 0.02
    p["Wproj"], p["bproj"] = lin(ks[4], C, C)
    p["Ws2"], bs2 = lin(ks[5], n_style, 2 * C)
    p["bs2"] = bs2.at[C:].add(1.0)
    p["Wmlp1"], p["bmlp1"] = lin(ks[6], C, hid)
    p["Wmlp2"], p["bmlp2"] = lin(ks[7], hid, C)
    return p


# -----------------------------------------------------------------------------
if __name__ == "__main__":
    B, H, Wimg, C = 2, 8, 8, 16
    n_style, hid, window_dim, heads = 16, 32, 4, 4
    L = H * Wimg

    # window-size / shift adjustment as in the module's __init__
    ws = window_dim
    shift = ws // 2
    if ws > H or ws > Wimg:
        ws = min(H, Wimg)
        shift = 0

    cfg = dict(H=H, W=Wimg, window_dim=ws, heads=heads, shift=shift,
               attn_mask=build_attn_mask(H, Wimg, ws, shift) if shift > 0 else None)

    key = jax.random.PRNGKey(0)
    kx, ksty, kp = jax.random.split(key, 3)
    x = jax.random.normal(kx, (B, L, C), jnp.float32)
    style = jax.random.normal(ksty, (B, n_style), jnp.float32)
    params = init_params(kp, C, n_style, hid, ws, heads)

    # f32-accurate reference (TPU default matmul precision is bf16-level,
    # so force full precision for the comparison baseline).
    with jax.default_matmul_precision("highest"):
        ref = jax.block_until_ready(style_swin_block_ref(x, style, params, cfg))
    ref_norm = float(jnp.linalg.norm(ref)) + 1e-6

    # 1) structural check with f32 compute dtype
    out_f32 = jax.block_until_ready(
        style_swin_block_pallas(x, style, params, cfg, compute_dtype=jnp.float32))
    assert out_f32.shape == (B, L, C), out_f32.shape
    assert bool(jnp.all(jnp.isfinite(out_f32))), "non-finite f32 output"
    rel32 = float(jnp.linalg.norm(out_f32 - ref)) / ref_norm
    assert rel32 < 5e-3, f"f32 relative L2 err {rel32}"

    # 2) optimized bf16-matmul path (production configuration), loose tolerance
    out_bf16 = jax.block_until_ready(
        style_swin_block_pallas(x, style, params, cfg, compute_dtype=jnp.bfloat16))
    assert out_bf16.shape == (B, L, C), out_bf16.shape
    assert bool(jnp.all(jnp.isfinite(out_bf16))), "non-finite bf16 output"
    rel16 = float(jnp.linalg.norm(out_bf16 - ref)) / ref_norm
    assert rel16 < 5e-2, f"bf16 relative L2 err {rel16}"

    print("KERNEL_OK")
</pallas_src>

<mosaic_0001>
module attributes {stable_mosaic.version = 11 : i64} {
  func.func @adain_qkv_kernel(%arg0: i32, %arg1: i32, %arg2: memref<1x64x16xf32, #tpu.memory_space<vmem>>, %arg3: memref<1x1x16xf32, #tpu.memory_space<vmem>>, %arg4: memref<1x1x16xf32, #tpu.memory_space<vmem>>, %arg5: memref<16x48xf32, #tpu.memory_space<vmem>>, %arg6: memref<1x48xf32, #tpu.memory_space<vmem>>, %arg7: memref<1x64x48xf32, #tpu.memory_space<vmem>>) attributes {dimension_semantics = [#tpu.dimension_semantics<parallel>, #tpu.dimension_semantics<parallel>], iteration_bounds = array<i64: 2, 1>, scalar_prefetch = 0 : i64, scratch_operands = 0 : i64, tpu.core_type = #tpu.core_type<tc>, window_params = [{transform_indices = @transform_0, window_bounds = array<i64: 1, 64, 16>}, {transform_indices = @transform_1, window_bounds = array<i64: 1, 1, 16>}, {transform_indices = @transform_2, window_bounds = array<i64: 1, 1, 16>}, {pipeline_mode = #tpu.pipeline_mode<synchronous>, transform_indices = @transform_3, window_bounds = array<i64: 16, 48>}, {pipeline_mode = #tpu.pipeline_mode<synchronous>, transform_indices = @transform_4, window_bounds = array<i64: 1, 48>}, {transform_indices = @transform_5, window_bounds = array<i64: 1, 64, 48>}]} {
    %c0 = arith.constant 0 : index
    %c0_0 = arith.constant 0 : index
    %c0_1 = arith.constant 0 : index
    %0 = vector.load %arg2[%c0, %c0_0, %c0_1] : memref<1x64x16xf32, #tpu.memory_space<vmem>>, vector<1x64x16xf32>
    %1 = vector.shape_cast %0 : vector<1x64x16xf32> to vector<64x16xf32>
    %c0_2 = arith.constant 0 : index
    %c0_3 = arith.constant 0 : index
    %c0_4 = arith.constant 0 : index
    %2 = vector.load %arg3[%c0_2, %c0_3, %c0_4] : memref<1x1x16xf32, #tpu.memory_space<vmem>>, vector<1x1x16xf32>
    %3 = vector.shape_cast %2 : vector<1x1x16xf32> to vector<1x16xf32>
    %4 = vector.broadcast %3 : vector<1x16xf32> to vector<64x16xf32>
    %5 = arith.mulf %1, %4 : vector<64x16xf32>
    %c0_5 = arith.constant 0 : index
    %c0_6 = arith.constant 0 : index
    %c0_7 = arith.constant 0 : index
    %6 = vector.load %arg4[%c0_5, %c0_6, %c0_7] : memref<1x1x16xf32, #tpu.memory_space<vmem>>, vector<1x1x16xf32>
    %7 = vector.shape_cast %6 : vector<1x1x16xf32> to vector<1x16xf32>
    %8 = vector.broadcast %7 : vector<1x16xf32> to vector<64x16xf32>
    %9 = arith.addf %5, %8 : vector<64x16xf32>
    %c0_8 = arith.constant 0 : index
    %c0_9 = arith.constant 0 : index
    %10 = vector.load %arg5[%c0_8, %c0_9] : memref<16x48xf32, #tpu.memory_space<vmem>>, vector<16x48xf32>
    %cst = arith.constant dense<0.000000e+00> : vector<64x48xf32>
    %11 = tpu.matmul %9, %10, %cst {dimension_numbers = #tpu.dot_dimension_numbers<[1], [0], [0], [1], [0, 0, 1, 1], [], []>} : vector<64x16xf32>, vector<16x48xf32>, vector<64x48xf32> -> vector<64x48xf32>
    %c0_10 = arith.constant 0 : index
    %c0_11 = arith.constant 0 : index
    %12 = vector.load %arg6[%c0_10, %c0_11] : memref<1x48xf32, #tpu.memory_space<vmem>>, vector<1x48xf32>
    %13 = vector.broadcast %12 : vector<1x48xf32> to vector<64x48xf32>
    %14 = arith.addf %11, %13 : vector<64x48xf32>
    %c0_12 = arith.constant 0 : index
    %c0_13 = arith.constant 0 : index
    %c0_14 = arith.constant 0 : index
    %15 = vector.load %arg7[%c0_12, %c0_13, %c0_14] : memref<1x64x48xf32, #tpu.memory_space<vmem>>, vector<1x64x48xf32>
    %16 = vector.shape_cast %15 : vector<1x64x48xf32> to vector<64x48xf32>
    %17 = vector.shape_cast %14 : vector<64x48xf32> to vector<1x64x48xf32>
    tpu.vector_store %arg7[%c0_12, %c0_13, %c0_14], %17 {strides = array<i32>} : memref<1x64x48xf32, #tpu.memory_space<vmem>>, vector<1x64x48xf32>,
    return
  }
  func.func @transform_0(%arg0: i32, %arg1: i32) -> (i32, i32, i32) {
    %c0_i32 = arith.constant 0 : i32
    %c0_i32_0 = arith.constant 0 : i32
    return %arg0, %arg1, %c0_i32 : i32, i32, i32
  }
  func.func @transform_1(%arg0: i32, %arg1: i32) -> (i32, i32, i32) {
    %c0_i32 = arith.constant 0 : i32
    %c0_i32_0 = arith.constant 0 : i32
    %c0_i32_1 = arith.constant 0 : i32
    return %arg0, %c0_i32, %c0_i32_0 : i32, i32, i32
  }
  func.func @transform_2(%arg0: i32, %arg1: i32) -> (i32, i32, i32) {
    %c0_i32 = arith.constant 0 : i32
    %c0_i32_0 = arith.constant 0 : i32
    %c0_i32_1 = arith.constant 0 : i32
    return %arg0, %c0_i32, %c0_i32_0 : i32, i32, i32
  }
  func.func @transform_3(%arg0: i32, %arg1: i32) -> (i32, i32) {
    %c0_i32 = arith.constant 0 : i32
    %c0_i32_0 = arith.constant 0 : i32
    %c0_i32_1 = arith.constant 0 : i32
    return %c0_i32, %c0_i32_0 : i32, i32
  }
  func.func @transform_4(%arg0: i32, %arg1: i32) -> (i32, i32) {
    %c0_i32 = arith.constant 0 : i32
    %c0_i32_0 = arith.constant 0 : i32
    %c0_i32_1 = arith.constant 0 : i32
    return %c0_i32, %c0_i32_0 : i32, i32
  }
  func.func @transform_5(%arg0: i32, %arg1: i32) -> (i32, i32, i32) {
    %c0_i32 = arith.constant 0 : i32
    %c0_i32_0 = arith.constant 0 : i32
    return %arg0, %arg1, %c0_i32 : i32, i32, i32
  }
}

</mosaic_0001>

<llo_original>
// kernel: tpu_custom_call.1
$region0: #{tpu_custom_call.1}
  #allocation0 [shape = 'u32[]', space=smem, size = 0x4, offset = 0x4, fixed_abs, tag = 'smem constant byte address 0x4 - core index']
  #allocation1 [shape = 'u32[72,128]{1,0:T(1,128)}', space=vmem, size = 0x9000, scoped, tag = 'internal scratch']
  %s0 = inlined_call_operand.vmem [shape: f32[2,64,16], index: 0, kind: input, shape index: {}]
  %s1 = inlined_call_operand.vmem [shape: f32[2,1,16], index: 1, kind: input, shape index: {}]
  %s2 = inlined_call_operand.vmem [shape: f32[2,1,16], index: 2, kind: input, shape index: {}]
  %s3 = inlined_call_operand.vmem [shape: f32[16,48], index: 3, kind: input, shape index: {}]
  %s4 = inlined_call_operand.vmem [shape: f32[1,48], index: 4, kind: input, shape index: {}]
  %s5 = inlined_call_operand.vmem [shape: f32[2,64,48], index: 5, kind: output, shape index: {}]
  %s6 = sld [smem:[#allocation0]]
  $region53: #{tpu_custom_call.1} parent=0
    _
  %s8 = ssub.s32 1, %s6
  %s9 = scalar_select 0, %s8, %s6
  loop: start=0, step=1, limit=4
  $region2: #{tpu_custom_call.1} parent=0 // loop_pre_header
    _
  $region3: #{tpu_custom_call.1} parent=0 // loop_header
    %s11 = sphi 0, %s15
    %p12 = scmp.ge.s32.totalorder %s11, 4
    %s18 = sphi 0, %s30
    %s19 = sphi 0, %s26
    %s20 = sphi 0, %s18
    %s21 = sphi 0, %s19
    %s22 = sphi 0, %s20
    %s23 = sphi 0, %s21
    %s35 = sphi 0, %s37
    %s38 = sphi 0, %s35
    %s39 = sphi 0, %s38
    %s55 = sphi 0, %s39
    %s61 = sphi 0, %s63
    %s64 = sphi 0, %s61
    %s65 = sphi 0, %s64
    %s81 = sphi 0, %s65
    %s87 = sphi 0, %s89
    %s90 = sphi 0, %s87
    %s91 = sphi 0, %s90
    %s107 = sphi 0, %s91
    %s111 = sphi 0, %s111
    %s113 = sphi 0, %s111
    %s114 = sphi 0, %s113
    %s128 = sphi 0, %s114
    %s132 = sphi 0, %s132
    %s134 = sphi 0, %s132
    %s135 = sphi 0, %s134
    %s149 = sphi 0, %s135
    %s157 = sphi 0, %s159
    %s160 = sphi 0, %s157
    %s161 = sphi 0, %s160
    %s177 = sphi 0, %s161
  $region4: #{tpu_custom_call.1} parent=0 // loop_header_branch
    %14 = sbr.rel (%p12) target = $region8
  $region5: #{tpu_custom_call.1} parent=0 // loop_body
    %s16 = ssub.s32 %s11, 1
    %s17 = ssub.s32 %s11, 2
    %s24 = sadd.s32 1, %s19
    %p25 = scmp.ge.s32.totalorder %s24, 1
    %s26 = scalar_select %p25, 0, %s24
    %s27 = sadd.s32 1, %s18
    %s28 = scalar_select %p25, %s27, %s18
    %p29 = scmp.ge.s32.totalorder %s28, 2
    %s30 = scalar_select %p29, 0, %s28
    %s31 = ssub.s32 %s18, %s30
    %s32 = ssub.s32 %s19, %s26
    %s33 = sor.u32 %s31, %s32
    %p34 = scmp.eq.s32.totalorder %s33, 0
    %s36 = sadd.s32 %s35, 1
    %s37 = scalar_select %p34, %s35, %s36
    %p40 = pneg %p34
    %p41 = scmp.eq.s32.totalorder %s11, 1
    %p42 = por %p40, %p41
    %p43 = scmp.ne.s32.totalorder %s35, %s38
    %p44 = scmp.eq.s32.totalorder %s11, 0
    %p45 = por %p43, %p44
    %p46 = scmp.ne.s32.totalorder %s35, %s38
    %p47 = scmp.eq.s32.totalorder %s16, 1
    %p48 = por %p46, %p47
    %p49 = scmp.ne.s32.totalorder %s38, %s39
    %p50 = scmp.eq.s32.totalorder %s16, 0
    %p51 = por %p49, %p50
    %p52 = scmp.ne.s32.totalorder %s38, %s39
    %p53 = scmp.eq.s32.totalorder %s17, 1
    %p54 = por %p52, %p53
    %p56 = scmp.ne.s32.totalorder %s39, %s55
    %p57 = scmp.eq.s32.totalorder %s17, 0
    %p58 = por %p56, %p57
    %s59 = ssub.s32 %s18, %s30
    %p60 = scmp.eq.s32.totalorder %s59, 0
    %s62 = sadd.s32 %s61, 1
    %s63 = scalar_select %p60, %s61, %s62
    %p66 = pneg %p60
    %p67 = scmp.eq.s32.totalorder %s11, 1
    %p68 = por %p66, %p67
    %p69 = scmp.ne.s32.totalorder %s61, %s64
    %p70 = scmp.eq.s32.totalorder %s11, 0
    %p71 = por %p69, %p70
    %p72 = scmp.ne.s32.totalorder %s61, %s64
    %p73 = scmp.eq.s32.totalorder %s16, 1
    %p74 = por %p72, %p73
    %p75 = scmp.ne.s32.totalorder %s64, %s65
    %p76 = scmp.eq.s32.totalorder %s16, 0
    %p77 = por %p75, %p76
    %p78 = scmp.ne.s32.totalorder %s64, %s65
    %p79 = scmp.eq.s32.totalorder %s17, 1
    %p80 = por %p78, %p79
    %p82 = scmp.ne.s32.totalorder %s65, %s81
    %p83 = scmp.eq.s32.totalorder %s17, 0
    %p84 = por %p82, %p83
    %s85 = ssub.s32 %s18, %s30
    %p86 = scmp.eq.s32.totalorder %s85, 0
    %s88 = sadd.s32 %s87, 1
    %s89 = scalar_select %p86, %s87, %s88
    %p92 = pneg %p86
    %p93 = scmp.eq.s32.totalorder %s11, 1
    %p94 = por %p92, %p93
    %p95 = scmp.ne.s32.totalorder %s87, %s90
    %p96 = scmp.eq.s32.totalorder %s11, 0
    %p97 = por %p95, %p96
    %p98 = scmp.ne.s32.totalorder %s87, %s90
    %p99 = scmp.eq.s32.totalorder %s16, 1
    %p100 = por %p98, %p99
    %p101 = scmp.ne.s32.totalorder %s90, %s91
    %p102 = scmp.eq.s32.totalorder %s16, 0
    %p103 = por %p101, %p102
    %p104 = scmp.ne.s32.totalorder %s90, %s91
    %p105 = scmp.eq.s32.totalorder %s17, 1
    %p106 = por %p104, %p105
    %p108 = scmp.ne.s32.totalorder %s91, %s107
    %p109 = scmp.eq.s32.totalorder %s17, 0
    %p110 = por %p108, %p109
    %s112 = sadd.s32 %s111, 1
    %p115 = scmp.eq.s32.totalorder %s11, 1
    %p116 = scmp.ne.s32.totalorder %s111, %s113
    %p117 = scmp.eq.s32.totalorder %s11, 0
    %p118 = por %p116, %p117
    %p119 = scmp.ne.s32.totalorder %s111, %s113
    %p120 = scmp.eq.s32.totalorder %s16, 1
    %p121 = por %p119, %p120
    %p122 = scmp.ne.s32.totalorder %s113, %s114
    %p123 = scmp.eq.s32.totalorder %s16, 0
    %p124 = por %p122, %p123
    %p125 = scmp.ne.s32.totalorder %s113, %s114
    %p126 = scmp.eq.s32.totalorder %s17, 1
    %p127 = por %p125, %p126
    %p129 = scmp.ne.s32.totalorder %s114, %s128
    %p130 = scmp.eq.s32.totalorder %s17, 0
    %p131 = por %p129, %p130
    %s133 = sadd.s32 %s132, 1
    %p136 = scmp.eq.s32.totalorder %s11, 1
    %p137 = scmp.ne.s32.totalorder %s132, %s134
    %p138 = scmp.eq.s32.totalorder %s11, 0
    %p139 = por %p137, %p138
    %p140 = scmp.ne.s32.totalorder %s132, %s134
    %p141 = scmp.eq.s32.totalorder %s16, 1
    %p142 = por %p140, %p141
    %p143 = scmp.ne.s32.totalorder %s134, %s135
    %p144 = scmp.eq.s32.totalorder %s16, 0
    %p145 = por %p143, %p144
    %p146 = scmp.ne.s32.totalorder %s134, %s135
    %p147 = scmp.eq.s32.totalorder %s17, 1
    %p148 = por %p146, %p147
    %p150 = scmp.ne.s32.totalorder %s135, %s149
    %p151 = scmp.eq.s32.totalorder %s17, 0
    %p152 = por %p150, %p151
    %s153 = ssub.s32 %s18, %s30
    %s154 = ssub.s32 %s19, %s26
    %s155 = sor.u32 %s153, %s154
    %p156 = scmp.eq.s32.totalorder %s155, 0
    %s158 = sadd.s32 %s157, 1
    %s159 = scalar_select %p156, %s157, %s158
    %p162 = pneg %p156
    %p163 = scmp.eq.s32.totalorder %s11, 1
    %p164 = por %p162, %p163
    %p165 = scmp.ne.s32.totalorder %s157, %s160
    %p166 = scmp.eq.s32.totalorder %s11, 0
    %p167 = por %p165, %p166
    %p168 = scmp.ne.s32.totalorder %s157, %s160
    %p169 = scmp.eq.s32.totalorder %s16, 1
    %p170 = por %p168, %p169
    %p171 = scmp.ne.s32.totalorder %s160, %s161
    %p172 = scmp.eq.s32.totalorder %s16, 0
    %p173 = por %p171, %p172
    %p174 = scmp.ne.s32.totalorder %s160, %s161
    %p175 = scmp.eq.s32.totalorder %s17, 1
    %p176 = por %p174, %p175
    %p178 = scmp.ne.s32.totalorder %s161, %s177
    %p179 = scmp.eq.s32.totalorder %s17, 0
    %p180 = por %p178, %p179
    %p181 = scmp.le.s32.totalorder 1, %s11
    %p182 = scmp.lt.s32.totalorder %s11, 3
    %p183 = pnand %p181, %p182
    %p184 = pneg %p183
    // Predicated region
    $region9: #{tpu_custom_call.1} parent=5 // pred_check
      _
    $region10: #{tpu_custom_call.1} parent=5 // pred_check_branch
      %186 = sbr.rel (%p183) target = $region12
    $region11: #{tpu_custom_call.1} parent=5 // pred_region
      %s187 = ssub.s32 %s11, 1
      // Predicated region
      $region13: #{tpu_custom_call.1} parent=11 // pred_check
        %p188 = pneg %p124
      $region14: #{tpu_custom_call.1} parent=11 // pred_check_branch
        %190 = sbr.rel (%p188) target = $region16
      $region15: #{tpu_custom_call.1} parent=11 // pred_region
        _
      $region16: #{tpu_custom_call.1} parent=11 // pred_fallthru
        _
      // Predicated region
      $region17: #{tpu_custom_call.1} parent=11 // pred_check
        %p191 = pneg %p145
      $region18: #{tpu_custom_call.1} parent=11 // pred_check_branch
        %193 = sbr.rel (%p191) target = $region20
      $region19: #{tpu_custom_call.1} parent=11 // pred_region
        _
      $region20: #{tpu_custom_call.1} parent=11 // pred_fallthru
        _
    $region12: #{tpu_custom_call.1} parent=5 // pred_fallthru
      _
    %p194 = scmp.lt.s32.totalorder %s11, 2
    // Predicated region
    $region21: #{tpu_custom_call.1} parent=5 // pred_check
      %p195 = pneg %p194
    $region22: #{tpu_custom_call.1} parent=5 // pred_check_branch
      %197 = sbr.rel (%p195) target = $region24
    $region23: #{tpu_custom_call.1} parent=5 // pred_region
      // Predicated region
      $region25: #{tpu_custom_call.1} parent=23 // pred_check
        %p198 = pneg %p45
      $region26: #{tpu_custom_call.1} parent=23 // pred_check_branch
        %200 = sbr.rel (%p198) target = $region28
      $region27: #{tpu_custom_call.1} parent=23 // pred_region
        %s201 = smul.u32 8, %s19
        %p202 = scmp.lt.s32.totalorder %s18, 1
        %s203 = scalar_select %p202, %s18, 1
        %p204 = scmp.lt.s32.totalorder %s201, 7
        %s205 = scalar_select %p204, %s201, 7
        %s206 = smul.addr %s203, 8
        %s207 = sadd.s32 %s205, %s206
        %s208 = smul.addr %s207, 8
        %s209 = scalar_lea.vmem %s0, %s208
        %s210 = smul.u32 8, %s19
      $region28: #{tpu_custom_call.1} parent=23 // pred_fallthru
        _
      // Predicated region
      $region29: #{tpu_custom_call.1} parent=23 // pred_check
        %p211 = pneg %p71
      $region30: #{tpu_custom_call.1} parent=23 // pred_check_branch
        %213 = sbr.rel (%p211) target = $region32
      $region31: #{tpu_custom_call.1} parent=23 // pred_region
        %p214 = scmp.lt.s32.totalorder %s18, 1
        %s215 = scalar_select %p214, %s18, 1
        %s216 = scalar_lea.vmem %s1, %s215
      $region32: #{tpu_custom_call.1} parent=23 // pred_fallthru
        _
      // Predicated region
      $region33: #{tpu_custom_call.1} parent=23 // pred_check
        %p217 = pneg %p97
      $region34: #{tpu_custom_call.1} parent=23 // pred_check_branch
        %219 = sbr.rel (%p217) target = $region36
      $region35: #{tpu_custom_call.1} parent=23 // pred_region
        %p220 = scmp.lt.s32.totalorder %s18, 1
        %s221 = scalar_select %p220, %s18, 1
        %s222 = scalar_lea.vmem %s2, %s221
      $region36: #{tpu_custom_call.1} parent=23 // pred_fallthru
        _
    $region24: #{tpu_custom_call.1} parent=5 // pred_fallthru
      _
    %p223 = scmp.le.s32.totalorder 1, %s11
    %p224 = scmp.lt.s32.totalorder %s11, 3
    %p225 = pnand %p223, %p224
    %p226 = pneg %p225
    // Predicated region
    $region37: #{tpu_custom_call.1} parent=5 // pred_check
      _
    $region38: #{tpu_custom_call.1} parent=5 // pred_check_branch
      %228 = sbr.rel (%p225) target = $region40
    $region39: #{tpu_custom_call.1} parent=5 // pred_region
      %s229 = ssub.s32 %s11, 1
      %s230 = smul.u32 8, %s21
      %p231 = scmp.lt.s32.totalorder %s20, 1
      %s232 = scalar_select %p231, %s20, 1
      %p233 = scmp.lt.s32.totalorder %s230, 7
      %s234 = scalar_select %p233, %s230, 7
      %s235 = smul.addr %s232, 8
      %s236 = sadd.s32 %s234, %s235
      %s237 = smul.addr %s236, 8
      %s238 = scalar_lea.vmem %s0, %s237
      %p239 = pneg %p51
      %p240 = pneg %p48
      %p241 = scmp.lt.s32.totalorder %s20, 1
      %s242 = scalar_select %p241, %s20, 1
      %s243 = scalar_lea.vmem %s1, %s242
      %p244 = pneg %p77
      %p245 = pneg %p74
      %p246 = scmp.lt.s32.totalorder %s20, 1
      %s247 = scalar_select %p246, %s20, 1
      %s248 = scalar_lea.vmem %s2, %s247
      %p249 = pneg %p103
      %p250 = pneg %p100
      %p251 = pneg %p124
      %p252 = pneg %p121
      %p253 = pneg %p145
      %p254 = pneg %p142
      %p255 = pneg %p173
      %p256 = pneg %p170
      %s257 = smul.u32 8, %s21
      %p258 = scmp.lt.s32.totalorder %s20, 1
      %s259 = scalar_select %p258, %s20, 1
      %p260 = scmp.lt.s32.totalorder %s257, 7
      %s261 = scalar_select %p260, %s257, 7
      %s262 = smul.addr %s259, 8
      %s263 = sadd.s32 %s261, %s262
      %s264 = smul.addr %s263, 8
      %s265 = scalar_lea.vmem %s5, %s264
      %s266 = smul.u32 8, %s21
      %p267 = scmp.lt.s32.totalorder %s20, 1
      %s268 = scalar_select %p267, %s20, 1
      %p269 = scmp.lt.s32.totalorder %s266, 7
      %s270 = scalar_select %p269, %s266, 7
      %s271 = smul.addr %s268, 8
      %s272 = sadd.s32 %s270, %s271
      %s273 = smul.addr %s272, 8
      %s274 = scalar_lea.vmem %s0, %s273
      %s275 = smul.u32 8, %s21
      %p276 = scmp.lt.s32.totalorder %s20, 1
      %s277 = scalar_select %p276, %s20, 1
      %s278 = scalar_lea.vmem %s1, %s277
      %p279 = scmp.lt.s32.totalorder %s20, 1
      %s280 = scalar_select %p279, %s20, 1
      %s281 = scalar_lea.vmem %s2, %s280
      %s282 = smul.u32 8, %s21
      %p283 = scmp.lt.s32.totalorder %s20, 1
      %s284 = scalar_select %p283, %s20, 1
      %p285 = scmp.lt.s32.totalorder %s282, 7
      %s286 = scalar_select %p285, %s282, 7
      %s287 = smul.addr %s284, 8
      %s288 = sadd.s32 %s286, %s287
      %s289 = smul.addr %s288, 8
      %s290 = scalar_lea.vmem %s5, %s289
      %s291 = smul.u32 8, %s21
      %v292 = vld [vmem:[%s274] sm:$0xff]
      %v293 = vld [vmem:[%s274 + $0x8] sm:$0xff]
      %v294 = vld [vmem:[%s274 + $0x10] sm:$0xff]
      %v295 = vld [vmem:[%s274 + $0x18] sm:$0xff]
      %v296 = vld [vmem:[%s274 + $0x20] sm:$0xff]
      %v297 = vld [vmem:[%s274 + $0x28] sm:$0xff]
      %v298 = vld [vmem:[%s274 + $0x30] sm:$0xff]
      %v299 = vld [vmem:[%s274 + $0x38] sm:$0xff]
      %v300 = vld [vmem:[%s278] sm:$0x1]
      %v302 = vperm.slane %v300, 0
      %v304 = vmul.f32 %v292, %v302
      %v305 = vmul.f32 %v293, %v302
      %v306 = vmul.f32 %v294, %v302
      %v307 = vmul.f32 %v295, %v302
      %v308 = vmul.f32 %v296, %v302
      %v309 = vmul.f32 %v297, %v302
      %v310 = vmul.f32 %v298, %v302
      %v311 = vmul.f32 %v299, %v302
      %v312 = vld [vmem:[%s281] sm:$0x1]
      %v314 = vperm.slane %v312, 0
      %v316 = vadd.f32 %v304, %v314
      %v317 = vadd.f32 %v305, %v314
      %v318 = vadd.f32 %v306, %v314
      %v319 = vadd.f32 %v307, %v314
      %v320 = vadd.f32 %v308, %v314
      %v321 = vadd.f32 %v309, %v314
      %v322 = vadd.f32 %v310, %v314
      %v323 = vadd.f32 %v311, %v314
      %v324 = vld [vmem:[%s3] sm:$0xff]
      %v325 = vld [vmem:[%s3 + $0x8] sm:$0xff]
      %v326 = vld [vmem:[%s4] sm:$0x1]
      %v328 = vperm.slane %v326, 0
      %vm330 = vcmask 130048
      %v332 = vsel %vm330, %v316, 0
      %v335 = vsel %vm330, %v317, 0
      %v338 = vsel %vm330, %v318, 0
      %v341 = vsel %vm330, %v319, 0
      %v344 = vsel %vm330, %v320, 0
      %v347 = vsel %vm330, %v321, 0
      %v350 = vsel %vm330, %v322, 0
      %v353 = vsel %vm330, %v323, 0
      %355 = vmatpush.msra.mxu0 0.0
      %356 = vmatpush.msra.mxu0 0.0
      %357 = vmatpush.msra.mxu0 0.0
      %358 = vmatpush.msra.mxu0 0.0
      %359 = vmatpush.msra.mxu0 0.0
      %360 = vmatpush.msra.mxu0 0.0
      %361 = vmatpush.msra.mxu0 0.0
      %362 = vmatpush.msra.mxu0 0.0
      %363 = vmatpush.msra.mxu0 0.0
      %364 = vmatpush.msra.mxu0 0.0
      %365 = vmatpush.msra.mxu0 0.0
      %366 = vmatpush.msra.mxu0 0.0
      %367 = vmatpush.msra.mxu0 0.0
      %368 = vmatpush.msra.mxu0 0.0
      %369 = vmatpush.msra.mxu0 %v325
      %370 = vmatpush.msra.mxu0 %v324
      %371 = vmatmul.f32.gmra.mxu0 %v332
      %v372 = vpop.f32.mrf.mxu0
      %v373 = vadd.f32 %v328, %v372
      %374 = vmatmul.f32.gmra.mxu0 %v335
      %v375 = vpop.f32.mrf.mxu0
      %v376 = vadd.f32 %v328, %v375
      %377 = vmatmul.f32.gmra.mxu0 %v338
      %v378 = vpop.f32.mrf.mxu0
      %v379 = vadd.f32 %v328, %v378
      %380 = vmatmul.f32.gmra.mxu0 %v341
      %v381 = vpop.f32.mrf.mxu0
      %v382 = vadd.f32 %v328, %v381
      %383 = vmatmul.f32.gmra.mxu0 %v344
      %v384 = vpop.f32.mrf.mxu0
      %v385 = vadd.f32 %v328, %v384
      %386 = vmatmul.f32.gmra.mxu0 %v347
      %v387 = vpop.f32.mrf.mxu0
      %v388 = vadd.f32 %v328, %v387
      %389 = vmatmul.f32.gmra.mxu0 %v350
      %v390 = vpop.f32.mrf.mxu0
      %v391 = vadd.f32 %v328, %v390
      %392 = vmatmul.f32.gmra.mxu0 %v353
      %v393 = vpop.f32.mrf.mxu0
      %v394 = vadd.f32 %v328, %v393
      %395 = vdwg.mxu0
      %vm396 = vcmask 392192
      %397 = vst.msk [vmem:[%s290] sm:$0xff] %vm396, %v373
      %398 = vst.msk [vmem:[%s290 + $0x8] sm:$0xff] %vm396, %v376
      %399 = vst.msk [vmem:[%s290 + $0x10] sm:$0xff] %vm396, %v379
      %400 = vst.msk [vmem:[%s290 + $0x18] sm:$0xff] %vm396, %v382
      %401 = vst.msk [vmem:[%s290 + $0x20] sm:$0xff] %vm396, %v385
      %402 = vst.msk [vmem:[%s290 + $0x28] sm:$0xff] %vm396, %v388
      %403 = vst.msk [vmem:[%s290 + $0x30] sm:$0xff] %vm396, %v391
      %404 = vst.msk [vmem:[%s290 + $0x38] sm:$0xff] %vm396, %v394
      %s405 = smul.u32 8, %s21
      %p406 = scmp.lt.s32.totalorder %s20, 1
      %s407 = scalar_select %p406, %s20, 1
      %p408 = scmp.lt.s32.totalorder %s405, 7
      %s409 = scalar_select %p408, %s405, 7
      %s410 = smul.addr %s407, 8
      %s411 = sadd.s32 %s409, %s410
      %s412 = smul.addr %s411, 8
      %s413 = scalar_lea.vmem %s5, %s412
      // Predicated region
      $region41: #{tpu_custom_call.1} parent=39 // pred_check
        %p414 = pneg %p170
      $region42: #{tpu_custom_call.1} parent=39 // pred_check_branch
        %416 = sbr.rel (%p414) target = $region44
      $region43: #{tpu_custom_call.1} parent=39 // pred_region
        %s417 = smul.u32 8, %s21
      $region44: #{tpu_custom_call.1} parent=39 // pred_fallthru
        _
    $region40: #{tpu_custom_call.1} parent=5 // pred_fallthru
      _
    %p418 = scmp.le.s32.totalorder 2, %s11
    // Predicated region
    $region45: #{tpu_custom_call.1} parent=5 // pred_check
      %p419 = pneg %p418
    $region46: #{tpu_custom_call.1} parent=5 // pred_check_branch
      %421 = sbr.rel (%p419) target = $region48
    $region47: #{tpu_custom_call.1} parent=5 // pred_region
      %s422 = ssub.s32 %s11, 2
      // Predicated region
      $region49: #{tpu_custom_call.1} parent=47 // pred_check
        %p423 = pneg %p176
      $region50: #{tpu_custom_call.1} parent=47 // pred_check_branch
        %425 = sbr.rel (%p423) target = $region52
      $region51: #{tpu_custom_call.1} parent=47 // pred_region
        %s426 = smul.u32 8, %s23
        %p427 = scmp.lt.s32.totalorder %s22, 1
        %s428 = scalar_select %p427, %s22, 1
        %p429 = scmp.lt.s32.totalorder %s426, 7
        %s430 = scalar_select %p429, %s426, 7
        %s431 = smul.addr %s428, 8
        %s432 = sadd.s32 %s430, %s431
        %s433 = smul.addr %s432, 8
        %s434 = scalar_lea.vmem %s5, %s433
      $region52: #{tpu_custom_call.1} parent=47 // pred_fallthru
        _
    $region48: #{tpu_custom_call.1} parent=5 // pred_fallthru
      _
  $region6: #{tpu_custom_call.1} parent=0 // loop_footer
    %s15 = sadd.s32 1, %s11
  $region7: #{tpu_custom_call.1} parent=0 // loop_footer_branch
    %10 = sbr.rel target = $region3
  $region8: #{tpu_custom_call.1} parent=0 // loop_exit
    _

</llo_original>
